<compile_context>
chip_gen: v7x
topology: tpu7x:2x2x1
jax: 0.10.0
libtpu: 0.0.40
codegen_flags: <defaults>
</compile_context>

<pallas_src>
import functools

import jax
import jax.numpy as jnp
from jax import lax
from jax.experimental import pallas as pl
from jax.experimental.pallas import tpu as pltpu


def _coral_gram_kernel(src_ref, tgt_ref, gram_ref, *, d, steps_per_core,
                       needs_mask, mxu_dtype):
    """Accumulate the fused (ns+nt, ns+nt) Gram of the centered operands.

    Grid = (core_split, feature_blocks_per_core).  The output block (one Gram
    slab per core-split index) stays resident across the inner feature axis,
    so it doubles as the accumulator (init at step 0, auto writeback at end).
    """
    c = pl.program_id(0)          # core-split index ("parallel")
    i = pl.program_id(1)          # feature-block index within this core

    @pl.when(i == 0)
    def _():
        gram_ref[...] = jnp.zeros_like(gram_ref)

    # Elementwise centering stays in f32 (v5e has no bf16 VPU); inputs stream
    # in their native dtype and are upcast here (no wrapper-side casts).
    s = src_ref[...].astype(jnp.float32)          # (ns, bd)
    t = tgt_ref[...].astype(jnp.float32)          # (nt, bd)
    bd = s.shape[1]

    if needs_mask:
        # Ragged tail block (d % bd != 0) and/or a fully out-of-range block
        # (odd block count split across cores; its index_map is clamped):
        # zero columns >= d BEFORE the mean/centering so they contribute
        # exactly nothing to the Gram accumulators.
        g = c * steps_per_core + i                # global feature-block index
        col = lax.broadcasted_iota(jnp.int32, (1, bd), 1) + g * bd
        valid = col < d                           # (1, bd)
        s = jnp.where(valid, s, 0.0)
        t = jnp.where(valid, t, 0.0)

    # Per-feature-column centering (mean - x, matching the torch module; the
    # sign cancels in the Gram).  The 1/(n-1) covariance scaling is deferred
    # to the scalar epilogue.
    a = jnp.mean(s, axis=0, keepdims=True) - s    # (ns, bd)
    b = jnp.mean(t, axis=0, keepdims=True) - t    # (nt, bd)

    # One fused Gram per step: C = [a; b] (ns+nt, bd), accumulate C @ C.T in
    # f32 — a single MXU product + one RHS transpose instead of three.
    cm = jnp.concatenate([a, b], axis=0).astype(mxu_dtype)
    gram_ref[...] += lax.dot_general(
        cm, cm, (((1,), (1,)), ((), ())),
        preferred_element_type=jnp.float32)


def coral_loss(source, target, *, block_d=None, use_bf16_mxu=False,
               vmem_budget_bytes=16 * 1024 * 1024, core_split=2):
    """CORAL loss. source: (ns, d), target: (nt, d). Returns scalar float32.

    block_d: feature-axis tile.  None (default) -> derived from the VMEM
        budget (and clamped to d).  If given and < d it must be a multiple
        of 128.
    use_bf16_mxu: feed bf16 operands to the MXU (f32 accumulation).  Off by
        default — the trace-trick epilogue subtracts nearly equal terms when
        source/target covariances are close, and bf16 amplifies that.
    vmem_budget_bytes: budget for the double-buffered input tiles + resident
        Gram block; 16 MiB is safe on v5e/v6e (128 MiB) and v7x (64 MiB).
    core_split: leading "parallel" grid axis; splits the feature range across
        the two TensorCores on v7x (harmless serial loop on v5e/v6e).

    Pass bf16 inputs through natively (do NOT pre-upcast): HBM read of the
    two (n, d) arrays is the whole cost at realistic batch sizes.
    """
    ns, d = source.shape
    nt, d2 = target.shape
    assert d == d2, "source/target feature dims must match"
    assert ns > 1 and nt > 1, "CORAL needs >= 2 samples per domain (as in torch ref)"
    n_total = ns + nt

    # ---- feature-axis tile size from the VMEM budget ----------------------
    if block_d is None:
        gram_bytes = 2 * n_total * n_total * 4            # double-buffered output
        per_col = 2 * (ns * source.dtype.itemsize          # double-buffered
                       + nt * target.dtype.itemsize)       # input tiles
        budget = max(vmem_budget_bytes - gram_bytes, per_col * 128)
        bd = max((budget // per_col) // 128 * 128, 128)
    else:
        bd = block_d
    if bd >= d:
        bd = d                                             # single full-extent block
        n_blocks = 1
    else:
        assert bd % 128 == 0, "block_d must be a multiple of 128 when < d"
        n_blocks = pl.cdiv(d, bd)

    ncores = max(1, min(core_split, n_blocks))
    steps_per_core = pl.cdiv(n_blocks, ncores)
    # Mask needed for a ragged tail and/or clamped fully-out-of-range blocks.
    needs_mask = (d % bd != 0) or (ncores * steps_per_core != n_blocks)

    mxu_dtype = jnp.bfloat16 if use_bf16_mxu else jnp.float32
    kernel = functools.partial(
        _coral_gram_kernel, d=d, steps_per_core=steps_per_core,
        needs_mask=needs_mask, mxu_dtype=mxu_dtype)

    def feat_map(c, i):
        g = c * steps_per_core + i
        # Clamp so an (at most one) extra block stays in bounds; the kernel's
        # column mask zeroes its contribution entirely.
        return (0, jnp.minimum(g, n_blocks - 1))

    grams = pl.pallas_call(
        kernel,
        out_shape=jax.ShapeDtypeStruct((ncores, n_total, n_total), jnp.float32),
        grid_spec=pltpu.PrefetchScalarGridSpec(
            num_scalar_prefetch=0,
            grid=(ncores, steps_per_core),
            in_specs=[
                pl.BlockSpec((ns, bd), feat_map),
                pl.BlockSpec((nt, bd), feat_map),
            ],
            # One resident Gram slab per core-split index; it is the
            # accumulator across the inner (feature) reduction axis.
            out_specs=pl.BlockSpec((None, n_total, n_total),
                                   lambda c, i: (c, 0, 0)),
        ),
        compiler_params=pltpu.CompilerParams(
            dimension_semantics=("parallel", "arbitrary"),
            vmem_limit_bytes=32 << 20,
        ),
    )(source, target)

    # ---- tiny epilogue in plain JAX ((ns+nt)^2 elements) -------------------
    # Cross-core reduce, apply the deferred 1/(n-1) scalings, Frobenius norm
    # with +1/-2/+1 signs, divide by 4 d^2.
    G = jnp.sum(grams, axis=0)
    gss = G[:ns, :ns]
    gst = G[:ns, ns:]
    gtt = G[ns:, ns:]
    inv_s = 1.0 / (ns - 1.0)
    inv_t = 1.0 / (nt - 1.0)
    fro2 = (jnp.sum(gss * gss) * (inv_s * inv_s)
            - 2.0 * jnp.sum(gst * gst) * (inv_s * inv_t)
            + jnp.sum(gtt * gtt) * (inv_t * inv_t))
    return fro2 / (4.0 * d * d)


def _coral_loss_ref(source, target):
    """Pure-JAX reference (mirrors the PyTorch forward)."""
    ns, d = source.shape
    nt, _ = target.shape
    s = source.astype(jnp.float32)
    t = target.astype(jnp.float32)
    xm = jnp.mean(s, axis=0, keepdims=True) - s
    xc = xm.T @ xm / (ns - 1)
    xmt = jnp.mean(t, axis=0, keepdims=True) - t
    xct = xmt.T @ xmt / (nt - 1)
    diff = xc - xct
    return jnp.sum(diff * diff) / (4.0 * d * d)


if __name__ == "__main__":
    key = jax.random.PRNGKey(0)
    k1, k2, k3, k4 = jax.random.split(key, 4)

    # Small demo shapes consistent with the module (rows=samples, cols=features).
    ns, nt, d = 8, 16, 32
    source = jax.random.normal(k1, (ns, d), dtype=jnp.float32)
    target = 0.5 * jax.random.normal(k2, (nt, d), dtype=jnp.float32) + 0.1

    loss = jax.block_until_ready(coral_loss(source, target))
    ref = jax.block_until_ready(_coral_loss_ref(source, target))
    assert jnp.allclose(loss, ref, rtol=1e-4, atol=1e-6), (loss, ref)

    # Larger feature dim with an explicit small tile: exercises the multi-block
    # pipelined grid, the in-kernel ragged-tail mask (1280 % 512 != 0), the
    # 2-way core split and a clamped fully-out-of-range block (3 blocks over
    # 2 cores -> 4 grid steps).
    ns2, nt2, d2 = 8, 16, 1280
    src2 = jax.random.normal(k3, (ns2, d2), dtype=jnp.float32)
    tgt2 = 0.5 * jax.random.normal(k4, (nt2, d2), dtype=jnp.float32) + 0.1

    ref2 = jax.block_until_ready(_coral_loss_ref(src2, tgt2))
    loss2 = jax.block_until_ready(coral_loss(src2, tgt2, block_d=512))
    assert jnp.allclose(loss2, ref2, rtol=1e-4, atol=1e-6), (loss2, ref2)

    # Auto-sized tile (VMEM-budget-derived; single full-extent block here).
    loss2b = jax.block_until_ready(coral_loss(src2, tgt2))
    assert jnp.allclose(loss2b, ref2, rtol=1e-4, atol=1e-6), (loss2b, ref2)

    # Native bf16 inputs streamed without wrapper-side upcast.
    src_bf = src2.astype(jnp.bfloat16)
    tgt_bf = tgt2.astype(jnp.bfloat16)
    loss_bf = jax.block_until_ready(coral_loss(src_bf, tgt_bf, block_d=512))
    ref_bf = jax.block_until_ready(_coral_loss_ref(src_bf, tgt_bf))
    assert jnp.allclose(loss_bf, ref_bf, rtol=1e-3, atol=1e-5), (loss_bf, ref_bf)

    # bf16-MXU operands (f32 accumulation), relaxed tolerance.
    loss3 = jax.block_until_ready(
        coral_loss(src2, tgt2, block_d=512, use_bf16_mxu=True))
    assert jnp.allclose(loss3, ref2, rtol=5e-2, atol=1e-3), (loss3, ref2)

    print("KERNEL_OK")
</pallas_src>

<mosaic_0001>
module attributes {stable_mosaic.version = 11 : i64} {
  func.func @_coral_gram_kernel(%arg0: i32, %arg1: i32, %arg2: memref<8x32xf32, #tpu.memory_space<vmem>>, %arg3: memref<16x32xf32, #tpu.memory_space<vmem>>, %arg4: memref<1x24x24xf32, #tpu.memory_space<vmem>>) attributes {dimension_semantics = [#tpu.dimension_semantics<parallel>, #tpu.dimension_semantics<arbitrary>], iteration_bounds = array<i64: 1, 1>, scalar_prefetch = 0 : i64, scratch_operands = 0 : i64, tpu.core_type = #tpu.core_type<tc>, window_params = [{transform_indices = @transform_0, window_bounds = array<i64: 8, 32>}, {transform_indices = @transform_1, window_bounds = array<i64: 16, 32>}, {transform_indices = @transform_2, window_bounds = array<i64: 1, 24, 24>}]} {
    %c0_i32 = arith.constant 0 : i32
    %0 = arith.cmpi eq, %arg1, %c0_i32 : i32
    %1 = arith.extui %0 : i1 to i32
    %c0_i32_0 = arith.constant 0 : i32
    %2 = arith.cmpi ne, %1, %c0_i32_0 : i32
    scf.if %2 {
      %cst_14 = arith.constant 0.000000e+00 : f32
      %25 = vector.broadcast %cst_14 : f32 to vector<24x24xf32>
      %c0_15 = arith.constant 0 : index
      %c0_16 = arith.constant 0 : index
      %c0_17 = arith.constant 0 : index
      %26 = vector.load %arg4[%c0_15, %c0_16, %c0_17] : memref<1x24x24xf32, #tpu.memory_space<vmem>>, vector<1x24x24xf32>
      %27 = vector.shape_cast %26 : vector<1x24x24xf32> to vector<24x24xf32>
      %28 = vector.shape_cast %25 : vector<24x24xf32> to vector<1x24x24xf32>
      tpu.vector_store %arg4[%c0_15, %c0_16, %c0_17], %28 {strides = array<i32>} : memref<1x24x24xf32, #tpu.memory_space<vmem>>, vector<1x24x24xf32>,
    } else {
    }
    %c0 = arith.constant 0 : index
    %c0_1 = arith.constant 0 : index
    %3 = vector.load %arg2[%c0, %c0_1] : memref<8x32xf32, #tpu.memory_space<vmem>>, vector<8x32xf32>
    %c0_2 = arith.constant 0 : index
    %c0_3 = arith.constant 0 : index
    %4 = vector.load %arg3[%c0_2, %c0_3] : memref<16x32xf32, #tpu.memory_space<vmem>>, vector<16x32xf32>
    %cst = arith.constant dense<0.000000e+00> : vector<32xf32>
    %5 = vector.multi_reduction <add>, %3, %cst [0] : vector<8x32xf32> to vector<32xf32>
    %6 = vector.shape_cast %5 : vector<32xf32> to vector<1x32xf32>
    %cst_4 = arith.constant 8.000000e+00 : f32
    %7 = vector.broadcast %cst_4 : f32 to vector<1x32xf32>
    %8 = arith.divf %6, %7 : vector<1x32xf32>
    %9 = vector.broadcast %8 : vector<1x32xf32> to vector<8x32xf32>
    %10 = arith.subf %9, %3 : vector<8x32xf32>
    %cst_5 = arith.constant dense<0.000000e+00> : vector<32xf32>
    %11 = vector.multi_reduction <add>, %4, %cst_5 [0] : vector<16x32xf32> to vector<32xf32>
    %12 = vector.shape_cast %11 : vector<32xf32> to vector<1x32xf32>
    %cst_6 = arith.constant 1.600000e+01 : f32
    %13 = vector.broadcast %cst_6 : f32 to vector<1x32xf32>
    %14 = arith.divf %12, %13 : vector<1x32xf32>
    %15 = vector.broadcast %14 : vector<1x32xf32> to vector<16x32xf32>
    %16 = arith.subf %15, %4 : vector<16x32xf32>
    %17 = tpu.concatenate %10, %16 in 0 : vector<8x32xf32>, vector<16x32xf32> -> vector<24x32xf32>
    %c0_7 = arith.constant 0 : index
    %c0_8 = arith.constant 0 : index
    %c0_9 = arith.constant 0 : index
    %18 = vector.load %arg4[%c0_7, %c0_8, %c0_9] : memref<1x24x24xf32, #tpu.memory_space<vmem>>, vector<1x24x24xf32>
    %19 = vector.shape_cast %18 : vector<1x24x24xf32> to vector<24x24xf32>
    %cst_10 = arith.constant dense<0.000000e+00> : vector<24x24xf32>
    %20 = tpu.matmul %17, %17, %cst_10 {dimension_numbers = #tpu.dot_dimension_numbers<[1], [1], [0], [0], [0, 0, 1, 0], [], []>} : vector<24x32xf32>, vector<24x32xf32>, vector<24x24xf32> -> vector<24x24xf32>
    %21 = arith.addf %19, %20 : vector<24x24xf32>
    %c0_11 = arith.constant 0 : index
    %c0_12 = arith.constant 0 : index
    %c0_13 = arith.constant 0 : index
    %22 = vector.load %arg4[%c0_11, %c0_12, %c0_13] : memref<1x24x24xf32, #tpu.memory_space<vmem>>, vector<1x24x24xf32>
    %23 = vector.shape_cast %22 : vector<1x24x24xf32> to vector<24x24xf32>
    %24 = vector.shape_cast %21 : vector<24x24xf32> to vector<1x24x24xf32>
    tpu.vector_store %arg4[%c0_11, %c0_12, %c0_13], %24 {strides = array<i32>} : memref<1x24x24xf32, #tpu.memory_space<vmem>>, vector<1x24x24xf32>,
    return
  }
  func.func @transform_0(%arg0: i32, %arg1: i32) -> (i32, i32) {
    %c1_i32 = arith.constant 1 : i32
    %0 = arith.muli %arg0, %c1_i32 : i32
    %1 = arith.addi %0, %arg1 : i32
    %c0_i32 = arith.constant 0 : i32
    %2 = arith.minsi %1, %c0_i32 : i32
    %c0_i32_0 = arith.constant 0 : i32
    %c0_i32_1 = arith.constant 0 : i32
    return %c0_i32_0, %2 : i32, i32
  }
  func.func @transform_1(%arg0: i32, %arg1: i32) -> (i32, i32) {
    %c1_i32 = arith.constant 1 : i32
    %0 = arith.muli %arg0, %c1_i32 : i32
    %1 = arith.addi %0, %arg1 : i32
    %c0_i32 = arith.constant 0 : i32
    %2 = arith.minsi %1, %c0_i32 : i32
    %c0_i32_0 = arith.constant 0 : i32
    %c0_i32_1 = arith.constant 0 : i32
    return %c0_i32_0, %2 : i32, i32
  }
  func.func @transform_2(%arg0: i32, %arg1: i32) -> (i32, i32, i32) {
    %c0_i32 = arith.constant 0 : i32
    %c0_i32_0 = arith.constant 0 : i32
    %c0_i32_1 = arith.constant 0 : i32
    return %arg0, %c0_i32, %c0_i32_0 : i32, i32, i32
  }
}

</mosaic_0001>

<llo_original>
// kernel: tpu_custom_call.1
$region0: #{tpu_custom_call.1}
  #allocation0 [shape = 'u32[]', space=smem, size = 0x4, offset = 0x4, fixed_abs, tag = 'smem constant byte address 0x4 - core index']
  #allocation1 [shape = 'u32[144,128]{1,0:T(1,128)}', space=vmem, size = 0x12000, scoped, tag = 'internal scratch']
  %s0 = inlined_call_operand.hbm [shape: f32[8,32], index: 0, kind: input, shape index: {}]
  %s1 = inlined_call_operand.hbm [shape: f32[16,32], index: 1, kind: input, shape index: {}]
  %s2 = inlined_call_operand.hbm [shape: f32[1,24,24], index: 2, kind: output, shape index: {}]
  %s3 = sld [smem:[#allocation0]]
  $region30: #{tpu_custom_call.1} parent=0
    _
  %s5 = ssub.s32 1, %s3
  %s6 = scalar_select 0, %s5, %s3
  $region1: #{tpu_custom_call.1} parent=0
    #allocation2 [shape = 'u8[4096]{0}', space=vmem, size = 0x1000, scoped, tag = 'input window, operand 0, single buffered']
    #allocation3 [shape = 's32[1]{0}', space=sflag, size = 0x4, scoped, tag = 'scoped memory for tpu_custom_call.1']
    #allocation4 [shape = 's32[1]{0}', space=sflag, size = 0x4, scoped, tag = 'scoped memory for tpu_custom_call.1']
    #allocation5 [shape = 'u8[8192]{0}', space=vmem, size = 0x2000, scoped, tag = 'input window, operand 1, single buffered']
    #allocation6 [shape = 's32[1]{0}', space=sflag, size = 0x4, scoped, tag = 'scoped memory for tpu_custom_call.1']
    #allocation7 [shape = 'u8[12288]{0}', space=vmem, size = 0x3000, scoped, tag = 'output window, operand 0, single buffered']
    %7 = vsyncpa [#allocation3], 0
    %8 = vsyncpa [#allocation6], 0
    %9 = vsyncpa [#allocation4], 0
    // Predicated region
    $region2: #{tpu_custom_call.1} parent=1 // pred_check
      _
    $region3: #{tpu_custom_call.1} parent=1 // pred_check_branch
      %11 = sbr.rel (0) target = $region5
    $region4: #{tpu_custom_call.1} parent=1 // pred_region
      %s12 = sadd.s32 0, 0
      %p13 = scmp.lt.s32.totalorder %s12, 0
      %s14 = scalar_select %p13, %s12, 0
      %s16 = ssub.s32 128, 128
      %17 = vsyncadd [#allocation3], %s16
      %s18 = smul.addr %s14, 128
      %s19 = scalar_lea.hbm %s0, %s18
      %s21 = sshll.u32 [#allocation2], 4
      %s22 = int_to_ptr.vmem [resolvable:$true] %s21
      %24 = dma.hbm_to_vmem [thread:$0]  %s19, 128, %s22, [#allocation3]
    $region5: #{tpu_custom_call.1} parent=1 // pred_fallthru
      _
    // Predicated region
    $region6: #{tpu_custom_call.1} parent=1 // pred_check
      _
    $region7: #{tpu_custom_call.1} parent=1 // pred_check_branch
      %26 = sbr.rel (0) target = $region9
    $region8: #{tpu_custom_call.1} parent=1 // pred_region
      %s27 = sadd.s32 0, 0
      %p28 = scmp.lt.s32.totalorder %s27, 0
      %s29 = scalar_select %p28, %s27, 0
      %s31 = ssub.s32 256, 256
      %32 = vsyncadd [#allocation6], %s31
      %s33 = smul.addr %s29, 128
      %s34 = scalar_lea.hbm %s1, %s33
      %s35 = sshll.u32 [#allocation5], 4
      %s36 = int_to_ptr.vmem [resolvable:$true] %s35
      %41 = dma.hbm_to_vmem [thread:$0]  %s34, 256, %s36, [#allocation6], 128, 128, 8
    $region9: #{tpu_custom_call.1} parent=1 // pred_fallthru
      _
    // Predicated region
    $region10: #{tpu_custom_call.1} parent=1 // pred_check
      _
    $region11: #{tpu_custom_call.1} parent=1 // pred_check_branch
      %43 = sbr.rel (0) target = $region13
    $region12: #{tpu_custom_call.1} parent=1 // pred_region
      %44 = dma.done [#allocation3], 128
    $region13: #{tpu_custom_call.1} parent=1 // pred_fallthru
      _
    // Predicated region
    $region14: #{tpu_custom_call.1} parent=1 // pred_check
      _
    $region15: #{tpu_custom_call.1} parent=1 // pred_check_branch
      %46 = sbr.rel (0) target = $region17
    $region16: #{tpu_custom_call.1} parent=1 // pred_region
      %47 = dma.done [#allocation6], 256
    $region17: #{tpu_custom_call.1} parent=1 // pred_fallthru
      _
    %s48 = sadd.s32 0, 0
    %p49 = scmp.lt.s32.totalorder %s48, 0
    %s50 = scalar_select %p49, %s48, 0
    %s51 = sadd.s32 0, 0
    %p52 = scmp.lt.s32.totalorder %s51, 0
    %s53 = scalar_select %p52, %s51, 0
    %p54 = scmp.eq.s32.totalorder 0, 0
    // Predicated region
    $region18: #{tpu_custom_call.1} parent=1 // pred_check
      %p55 = pneg %p54
    $region19: #{tpu_custom_call.1} parent=1 // pred_check_branch
      %57 = sbr.rel (%p55) target = $region21
    $region20: #{tpu_custom_call.1} parent=1 // pred_region
      %vm58 = vcmask 195584
      %59 = vst.msk [vmem:[#allocation7] sm:$0xff] %vm58, 0.0
      %60 = vst.msk [vmem:[#allocation7 + $0x8] sm:$0xff] %vm58, 0.0
      %61 = vst.msk [vmem:[#allocation7 + $0x10] sm:$0xff] %vm58, 0.0
    $region21: #{tpu_custom_call.1} parent=1 // pred_fallthru
      _
    %v62 = vld [vmem:[#allocation2] sm:$0xff]
    %v63 = vld [vmem:[#allocation5] sm:$0xff]
    %v64 = vld [vmem:[#allocation5 + $0x8] sm:$0xff]
    %vm65 = vcmask 261120
    %v66 = vsel %vm65, %v62, 0.0
    %v67 = vrot.slane %v66, 4
    %v68 = vadd.f32 %v66, %v67
    %v69 = vrot.slane %v68, 2
    %v70 = vadd.f32 %v68, %v69
    %v71 = vrot.slane %v70, 1
    %v72 = vadd.f32 %v70, %v71
    %v73 = vrcp.pop 8.0
    %v74 = vmul.f32 %v72, %v73
    %v75 = vsub.f32 %v74, %v62
    %v76 = vsel %vm65, %v63, 0.0
    %v77 = vsel %vm65, %v64, 0.0
    %v78 = vadd.f32 %v76, %v77
    %v79 = vrot.slane %v78, 4
    %v80 = vadd.f32 %v78, %v79
    %v81 = vrot.slane %v80, 2
    %v82 = vadd.f32 %v80, %v81
    %v83 = vrot.slane %v82, 1
    %v84 = vadd.f32 %v82, %v83
    %v85 = vrcp.pop 16.0
    %v86 = vmul.f32 %v84, %v85
    %v87 = vsub.f32 %v86, %v63
    %v88 = vsub.f32 %v86, %v64
    %v89 = vld [vmem:[#allocation7] sm:$0xff]
    %v90 = vld [vmem:[#allocation7 + $0x8] sm:$0xff]
    %v91 = vld [vmem:[#allocation7 + $0x10] sm:$0xff]
    %v93 = vsel %vm65, %v75, 0
    %v96 = vsel %vm65, %v87, 0
    %v99 = vsel %vm65, %v88, 0
    %101 = vmatprep.subr.mxu0 0.0
    %102 = vmatpush1.xpose.msra.mxu0 %v93
    %103 = vmatprep.subr.mxu0 0.0
    %104 = vmatpush1.xpose.msra.mxu0 %v96
    %105 = vmatprep.subr.mxu0 0.0
    %106 = vmatpush1.xpose.msra.mxu0 %v99
    %107 = vmatprep.subr.mxu0 0.0
    %108 = vmatpush1.xpose.msra.mxu0 0.0
    %109 = vmatprep.subr.mxu0 0.0
    %110 = vmatpush1.xpose.msra.mxu0 0.0
    %111 = vmatprep.subr.mxu0 0.0
    %112 = vmatpush1.xpose.msra.mxu0 0.0
    %113 = vmatprep.subr.mxu0 0.0
    %114 = vmatpush1.xpose.msra.mxu0 0.0
    %115 = vmatprep.subr.mxu0 0.0
    %116 = vmatpush1.xpose.msra.mxu0 0.0
    %117 = vmatprep.subr.mxu0 0.0
    %118 = vmatpush1.xpose.msra.mxu0 0.0
    %119 = vmatprep.subr.mxu0 0.0
    %120 = vmatpush1.xpose.msra.mxu0 0.0
    %121 = vmatprep.subr.mxu0 0.0
    %122 = vmatpush1.xpose.msra.mxu0 0.0
    %123 = vmatprep.subr.mxu0 0.0
    %124 = vmatpush1.xpose.msra.mxu0 0.0
    %125 = vmatprep.subr.mxu0 0.0
    %126 = vmatpush1.xpose.msra.mxu0 0.0
    %127 = vmatprep.subr.mxu0 0.0
    %128 = vmatpush1.xpose.msra.mxu0 0.0
    %129 = vmatprep.subr.mxu0 0.0
    %130 = vmatpush1.xpose.msra.mxu0 0.0
    %131 = vmatprep.subr.mxu0 0.0
    %132 = vmatpush1.xpose.msra.mxu0 0.0
    %133 = vmatprep.subr.mxu0 0.0
    %134 = vmatpush1.xpose.msra.mxu0 0.0
    %135 = vmatprep.subr.mxu0 0.0
    %136 = vmatpush1.xpose.msra.mxu0 0.0
    %137 = vmatprep.subr.mxu0 0.0
    %138 = vmatpush1.xpose.msra.mxu0 0.0
    %139 = vmatprep.subr.mxu0 0.0
    %140 = vmatpush1.xpose.msra.mxu0 0.0
    %141 = vmatprep.subr.mxu0 0.0
    %142 = vmatpush1.xpose.msra.mxu0 0.0
    %143 = vmatprep.subr.mxu0 0.0
    %144 = vmatpush1.xpose.msra.mxu0 0.0
    %145 = vmatprep.subr.mxu0 0.0
    %146 = vmatpush1.xpose.msra.mxu0 0.0
    %147 = vmatprep.subr.mxu0 0.0
    %148 = vmatpush1.xpose.msra.mxu0 0.0
    %149 = vmatprep.subr.mxu0 0.0
    %150 = vmatpush1.xpose.msra.mxu0 0.0
    %151 = vmatprep.subr.mxu0 0.0
    %152 = vmatpush1.xpose.msra.mxu0 0.0
    %153 = vmatprep.subr.mxu0 0.0
    %154 = vmatpush1.xpose.msra.mxu0 0.0
    %155 = vmatprep.subr.mxu0 0.0
    %156 = vmatpush1.xpose.msra.mxu0 0.0
    %157 = vmatprep.subr.mxu0 0.0
    %158 = vmatpush1.xpose.msra.mxu0 0.0
    %159 = vmatprep.subr.mxu0 0.0
    %160 = vmatpush1.xpose.msra.mxu0 0.0
    %161 = vmatprep.subr.mxu0 0.0
    %162 = vmatpush1.xpose.msra.mxu0 0.0
    %163 = vmatprep.subr.mxu0 0.0
    %164 = vmatpush1.xpose.msra.mxu0 0.0
    %165 = vmatprep.mubr.f32.mxu0 0.0
    %166 = vmatmul.mubr.f32.gmra.mrb[0].mxu0 %v93
    %v167 = vpop.f32.mrb[0].mxu0
    %v168 = vadd.f32 0.0, %v167
    %v169 = vpop.f32.mrb[0].mxu0
    %170 = vmatprep.mubr.f32.mxu0 0.0
    %171 = vmatmul.mubr.f32.gmra.mrb[0].mxu0 %v96
    %v172 = vpop.f32.mrb[0].mxu0
    %v173 = vadd.f32 0.0, %v172
    %v174 = vpop.f32.mrb[0].mxu0
    %175 = vmatprep.mubr.f32.mxu0 0.0
    %176 = vmatmul.mubr.f32.gmra.mrb[0].mxu0 %v99
    %v177 = vpop.f32.mrb[0].mxu0
    %v178 = vadd.f32 0.0, %v177
    %v179 = vpop.f32.mrb[0].mxu0
    %180 = vdwg.mxu0
    %v181 = vadd.f32 %v89, %v168
    %v182 = vadd.f32 %v90, %v173
    %v183 = vadd.f32 %v91, %v178
    %vm184 = vcmask 195584
    %185 = vst.msk [vmem:[#allocation7] sm:$0xff] %vm184, %v181
    %186 = vst.msk [vmem:[#allocation7 + $0x8] sm:$0xff] %vm184, %v182
    %187 = vst.msk [vmem:[#allocation7 + $0x10] sm:$0xff] %vm184, %v183
    // Predicated region
    $region22: #{tpu_custom_call.1} parent=1 // pred_check
      _
    $region23: #{tpu_custom_call.1} parent=1 // pred_check_branch
      %189 = sbr.rel (0) target = $region25
    $region24: #{tpu_custom_call.1} parent=1 // pred_region
      %s191 = ssub.s32 384, 384
      %192 = vsyncadd [#allocation4], %s191
      %s193 = sshll.u32 [#allocation7], 4
      %s194 = int_to_ptr.vmem [resolvable:$true] %s193
      %199 = dma.vmem_to_hbm [thread:$0]  %s194, 384, %s2, [#allocation4], 128, 128, 8
    $region25: #{tpu_custom_call.1} parent=1 // pred_fallthru
      _
    // Predicated region
    $region26: #{tpu_custom_call.1} parent=1 // pred_check
      _
    $region27: #{tpu_custom_call.1} parent=1 // pred_check_branch
      %201 = sbr.rel (0) target = $region29
    $region28: #{tpu_custom_call.1} parent=1 // pred_region
      %202 = dma.done [#allocation4], 384
    $region29: #{tpu_custom_call.1} parent=1 // pred_fallthru
      _
    %203 = vsyncpa [#allocation3], 1
    %204 = vsyncpa [#allocation6], 1
    %205 = vsyncpa [#allocation4], 1

</llo_original>
